<compile_context>
chip_gen: v7x
topology: tpu7x:2x2x1
jax: 0.10.0
libtpu: 0.0.40
codegen_flags: <defaults>
</compile_context>

<pallas_src>
import math

import jax
import jax.numpy as jnp
from jax.experimental import pallas as pl
from jax.experimental.pallas import tpu as pltpu


def _tokenizer_kernel(x_ref, s_ref, m_ref,
                      w_ref, band_ref, bias_ref, mask_enc_ref, pmask_enc_ref,
                      pos_ref, out_ref):
    # x_ref:         (TM, seg_len)    raw segments
    # s_ref:         (TM, n_bands)    band powers
    # m_ref:         (TM, 1)          mask in {0, 1}
    # w_ref:         (seg_len, d)     projection weight (resident, f32)
    # band_ref:      (n_bands, d)     band encoding (resident, f32)
    # bias_ref:      (1, d)
    # mask_enc_ref:  (1, seg_len)
    # pmask_enc_ref: (1, d)
    # pos_ref:       (TM, d)          positional encoding tiled to the row block
    # out_ref:       (TM, d)
    m = m_ref[...].astype(jnp.float32)                     # (TM, 1)
    one_minus_m = 1.0 - m

    # X = X*(1-mask) + mask_encoding*mask   (element-wise, f32)
    x = x_ref[...].astype(jnp.float32)
    x = x * one_minus_m + mask_enc_ref[...] * m

    # Softmax over bands (per-row; ragged-tail garbage rows stay row-local).
    s = s_ref[...].astype(jnp.float32)
    s = s - jnp.max(s, axis=-1, keepdims=True)
    e = jnp.exp(s)
    p = e * pl.reciprocal(jnp.sum(e, axis=-1, keepdims=True), approx=True)
    # Fold the T_s mask blend into the GEMM operand (mask is exactly {0,1}):
    #   (softmax(S) @ band) * (1-m)  ==  (softmax(S) * (1-m)) @ band
    p = p * one_minus_m

    # Two small MXU calls on in-register f32 values (no scratch round trip).
    acc = jnp.dot(x, w_ref[...], preferred_element_type=jnp.float32)
    acc = acc + jnp.dot(p, band_ref[...], preferred_element_type=jnp.float32)

    out = acc + bias_ref[...] + pmask_enc_ref[...] * m + pos_ref[...]
    out_ref[...] = out.astype(out_ref.dtype)


def linear_tokenizer_forward(X, S, mask, params, *,
                             row_tile_target=8192,
                             vmem_budget_bytes=40 * 1024 * 1024):
    """X: (B, C, n_segs, seg_len); S: (B, C, n_segs, n_bands);
    mask: (B, C, n_segs) float {0,1} or None.
    Returns T: (B, C, n_segs, d_model) in float32."""
    B, C, n_segs, seg_len = X.shape
    n_bands = S.shape[-1]
    d_model = params["proj_w"].shape[1]

    rows = B * C * n_segs

    # Row tile: multiple of lcm(8, n_segs) -> sublane alignment AND every tile
    # starts at a segment boundary (so one resident positional block works).
    lcm_rs = 8 * n_segs // math.gcd(8, n_segs)
    TM = max(lcm_rs, (row_tile_target // lcm_rs) * lcm_rs)
    # Keep at least 2 grid steps whenever rows allow it, so the single
    # "parallel" grid axis can shard across v7x's two TensorCores.
    TM = min(TM, max(lcm_rs, pl.cdiv(rows, 2 * lcm_rs) * lcm_rs))

    # Rough VMEM estimate: double-buffered x/s/m/out row blocks + resident
    # positional block + tiny resident weights. Keep well under v7x's 64 MiB.
    def vmem_est(tm):
        per_row = 4 * (seg_len + n_bands + 1 + d_model)      # f32 in + out
        resident = tm * d_model * 4                           # pos rows
        weights = 4 * ((seg_len + n_bands + 3) * d_model + seg_len)
        return 2 * tm * per_row + resident + weights

    while TM > lcm_rs and vmem_est(TM) > vmem_budget_bytes:
        TM = max(lcm_rs, (TM // 2 // lcm_rs) * lcm_rs)

    grid = (pl.cdiv(rows, TM),)

    # --- inputs: plain reshapes, no padding passes (casting happens in-kernel) ---
    x2 = X.reshape(rows, seg_len)
    s2 = S.reshape(rows, n_bands)
    if mask is None:
        m2 = jnp.zeros((rows, 1), dtype=jnp.float32)
    else:
        m2 = mask.reshape(rows, 1).astype(jnp.float32)

    # --- parameters (tiny, resident in VMEM, f32) ---
    f32 = jnp.float32
    w = params["proj_w"].astype(f32)                          # (seg_len, d_model)
    band = params["band_encoding"].astype(f32)                # (n_bands, d_model)
    bias = params["proj_b"].astype(f32).reshape(1, d_model)
    mask_enc = params["mask_encoding"].astype(f32).reshape(1, seg_len)
    pmask_enc = params["power_mask_encoding"].astype(f32).reshape(1, d_model)
    pos = params["positional_encoding"][:n_segs, :].astype(f32)
    pos_rows = jnp.tile(pos, (TM // n_segs, 1))               # (TM, d_model)

    out = pl.pallas_call(
        _tokenizer_kernel,
        out_shape=jax.ShapeDtypeStruct((rows, d_model), jnp.float32),
        grid=grid,
        in_specs=[
            pl.BlockSpec((TM, seg_len), lambda i: (i, 0)),        # X rows
            pl.BlockSpec((TM, n_bands), lambda i: (i, 0)),        # S rows
            pl.BlockSpec((TM, 1), lambda i: (i, 0)),              # mask rows
            pl.BlockSpec((seg_len, d_model), lambda i: (0, 0)),   # proj_w (resident)
            pl.BlockSpec((n_bands, d_model), lambda i: (0, 0)),   # band_encoding
            pl.BlockSpec((1, d_model), lambda i: (0, 0)),         # bias
            pl.BlockSpec((1, seg_len), lambda i: (0, 0)),         # mask_encoding
            pl.BlockSpec((1, d_model), lambda i: (0, 0)),         # power_mask_encoding
            pl.BlockSpec((TM, d_model), lambda i: (0, 0)),        # positional rows
        ],
        out_specs=pl.BlockSpec((TM, d_model), lambda i: (i, 0)),
        compiler_params=pltpu.CompilerParams(
            dimension_semantics=("parallel",),
            vmem_limit_bytes=min(48 * 1024 * 1024,
                                 max(8 * 1024 * 1024, 2 * vmem_est(TM))),
        ),
    )(x2, s2, m2, w, band, bias, mask_enc, pmask_enc, pos_rows)

    # No-op reshape (output was written at native width already).
    return out.reshape(B, C, n_segs, d_model)


def init_params(key, seg_len, d_model, n_bands, max_segs):
    k1, k2, k3 = jax.random.split(key, 3)
    # trunc_normal_ in [-2std, 2std] around mean
    band_encoding = jax.random.truncated_normal(k1, -2.0, 2.0, (n_bands, d_model)) * 1.0
    positional_encoding = jax.random.truncated_normal(k2, -2.0, 2.0, (max_segs, d_model)) * 1.0
    # nn.Linear weight is (d_model, seg_len); store transposed for x @ W
    proj_w = (jax.random.truncated_normal(k3, -2.0, 2.0, (d_model, seg_len)) * 0.02).T
    proj_b = jnp.zeros((d_model,), dtype=jnp.float32)
    mask_encoding = jnp.zeros((seg_len,), dtype=jnp.float32)
    power_mask_encoding = jnp.zeros((d_model,), dtype=jnp.float32)
    return {
        "band_encoding": band_encoding.astype(jnp.float32),
        "positional_encoding": positional_encoding.astype(jnp.float32),
        "proj_w": proj_w.astype(jnp.float32),
        "proj_b": proj_b,
        "mask_encoding": mask_encoding,
        "power_mask_encoding": power_mask_encoding,
    }


def reference_forward(X, S, mask, p):
    """Pure-JAX reference mirroring the PyTorch forward (f32)."""
    X = X.astype(jnp.float32)
    if mask is not None:
        m = mask[..., None].astype(jnp.float32)
        X = X * (1.0 - m) + p["mask_encoding"][None, None, None, :] * m
    T_x = jnp.einsum("bcsk,kd->bcsd", X, p["proj_w"]) + p["proj_b"]
    T_s = jnp.einsum("bcsk,kd->bcsd", jax.nn.softmax(S.astype(jnp.float32), axis=-1),
                     p["band_encoding"])
    if mask is not None:
        m = mask[..., None].astype(jnp.float32)
        T_s = T_s * (1.0 - m) + p["power_mask_encoding"][None, None, None, :] * m
    return T_x + T_s + p["positional_encoding"][: T_x.shape[-2], :]


if __name__ == "__main__":
    # small shapes consistent with the module
    batch, n_channels, n_segs, seg_len = 2, 4, 8, 16
    d_model, n_bands, max_segs = 32, 8, 16

    key = jax.random.PRNGKey(0)
    kx, ks, km, kp = jax.random.split(key, 4)

    X = jax.random.normal(kx, (batch, n_channels, n_segs, seg_len), dtype=jnp.float32)
    S = jax.random.normal(ks, (batch, n_channels, n_segs, n_bands), dtype=jnp.float32)
    mask = (jax.random.uniform(km, (batch, n_channels, n_segs)) < 0.3).astype(jnp.float32)

    params = init_params(kp, seg_len, d_model, n_bands, max_segs)

    T = linear_tokenizer_forward(X, S, mask, params)
    T = jax.block_until_ready(T)

    T_ref = reference_forward(X, S, mask, params)
    assert T.shape == (batch, n_channels, n_segs, d_model)
    # f32 MXU accumulation; only the approx EUP reciprocal in the softmax is inexact.
    assert jnp.allclose(T, T_ref, atol=2e-2, rtol=2e-2), "mismatch vs reference"

    print("KERNEL_OK")
</pallas_src>

<mosaic_0001>
module attributes {stable_mosaic.version = 11 : i64} {
  func.func @_tokenizer_kernel(%arg0: i32, %arg1: memref<32x16xf32, #tpu.memory_space<vmem>>, %arg2: memref<32x8xf32, #tpu.memory_space<vmem>>, %arg3: memref<32x1xf32, #tpu.memory_space<vmem>>, %arg4: memref<16x32xf32, #tpu.memory_space<vmem>>, %arg5: memref<8x32xf32, #tpu.memory_space<vmem>>, %arg6: memref<1x32xf32, #tpu.memory_space<vmem>>, %arg7: memref<1x16xf32, #tpu.memory_space<vmem>>, %arg8: memref<1x32xf32, #tpu.memory_space<vmem>>, %arg9: memref<32x32xf32, #tpu.memory_space<vmem>>, %arg10: memref<32x32xf32, #tpu.memory_space<vmem>>) attributes {dimension_semantics = [#tpu.dimension_semantics<parallel>], iteration_bounds = array<i64: 2>, scalar_prefetch = 0 : i64, scratch_operands = 0 : i64, tpu.core_type = #tpu.core_type<tc>, window_params = [{transform_indices = @transform_0, window_bounds = array<i64: 32, 16>}, {transform_indices = @transform_1, window_bounds = array<i64: 32, 8>}, {transform_indices = @transform_2, window_bounds = array<i64: 32, 1>}, {pipeline_mode = #tpu.pipeline_mode<synchronous>, transform_indices = @transform_3, window_bounds = array<i64: 16, 32>}, {pipeline_mode = #tpu.pipeline_mode<synchronous>, transform_indices = @transform_4, window_bounds = array<i64: 8, 32>}, {pipeline_mode = #tpu.pipeline_mode<synchronous>, transform_indices = @transform_5, window_bounds = array<i64: 1, 32>}, {pipeline_mode = #tpu.pipeline_mode<synchronous>, transform_indices = @transform_6, window_bounds = array<i64: 1, 16>}, {pipeline_mode = #tpu.pipeline_mode<synchronous>, transform_indices = @transform_7, window_bounds = array<i64: 1, 32>}, {pipeline_mode = #tpu.pipeline_mode<synchronous>, transform_indices = @transform_8, window_bounds = array<i64: 32, 32>}, {transform_indices = @transform_9, window_bounds = array<i64: 32, 32>}]} {
    %c0 = arith.constant 0 : index
    %c0_0 = arith.constant 0 : index
    %0 = vector.load %arg3[%c0, %c0_0] : memref<32x1xf32, #tpu.memory_space<vmem>>, vector<32x1xf32>
    %cst = arith.constant 1.000000e+00 : f32
    %1 = vector.broadcast %cst : f32 to vector<32x1xf32>
    %2 = arith.subf %1, %0 : vector<32x1xf32>
    %c0_1 = arith.constant 0 : index
    %c0_2 = arith.constant 0 : index
    %3 = vector.load %arg1[%c0_1, %c0_2] : memref<32x16xf32, #tpu.memory_space<vmem>>, vector<32x16xf32>
    %4 = vector.broadcast %2 : vector<32x1xf32> to vector<32x16xf32>
    %5 = arith.mulf %3, %4 : vector<32x16xf32>
    %c0_3 = arith.constant 0 : index
    %c0_4 = arith.constant 0 : index
    %6 = vector.load %arg7[%c0_3, %c0_4] : memref<1x16xf32, #tpu.memory_space<vmem>>, vector<1x16xf32>
    %7 = vector.broadcast %6 : vector<1x16xf32> to vector<32x16xf32>
    %8 = vector.broadcast %0 : vector<32x1xf32> to vector<32x16xf32>
    %9 = arith.mulf %7, %8 : vector<32x16xf32>
    %10 = arith.addf %5, %9 : vector<32x16xf32>
    %c0_5 = arith.constant 0 : index
    %c0_6 = arith.constant 0 : index
    %11 = vector.load %arg2[%c0_5, %c0_6] : memref<32x8xf32, #tpu.memory_space<vmem>>, vector<32x8xf32>
    %cst_7 = arith.constant dense<0xFF800000> : vector<32xf32>
    %12 = vector.multi_reduction <maximumf>, %11, %cst_7 [1] : vector<32x8xf32> to vector<32xf32>
    %13 = vector.shape_cast %12 : vector<32xf32> to vector<32x1xf32>
    %14 = vector.broadcast %13 : vector<32x1xf32> to vector<32x8xf32>
    %15 = arith.subf %11, %14 : vector<32x8xf32>
    %16 = math.exp %15 : vector<32x8xf32>
    %cst_8 = arith.constant dense<0.000000e+00> : vector<32xf32>
    %17 = vector.multi_reduction <add>, %16, %cst_8 [1] : vector<32x8xf32> to vector<32xf32>
    %18 = vector.shape_cast %17 : vector<32xf32> to vector<32x1xf32>
    %19 = tpu.reciprocal %18 {approx = true} : vector<32x1xf32> -> vector<32x1xf32>
    %20 = vector.broadcast %19 : vector<32x1xf32> to vector<32x8xf32>
    %21 = arith.mulf %16, %20 : vector<32x8xf32>
    %22 = vector.broadcast %2 : vector<32x1xf32> to vector<32x8xf32>
    %23 = arith.mulf %21, %22 : vector<32x8xf32>
    %c0_9 = arith.constant 0 : index
    %c0_10 = arith.constant 0 : index
    %24 = vector.load %arg4[%c0_9, %c0_10] : memref<16x32xf32, #tpu.memory_space<vmem>>, vector<16x32xf32>
    %cst_11 = arith.constant dense<0.000000e+00> : vector<32x32xf32>
    %25 = tpu.matmul %10, %24, %cst_11 {dimension_numbers = #tpu.dot_dimension_numbers<[1], [0], [0], [1], [0, 0, 1, 1], [], []>} : vector<32x16xf32>, vector<16x32xf32>, vector<32x32xf32> -> vector<32x32xf32>
    %c0_12 = arith.constant 0 : index
    %c0_13 = arith.constant 0 : index
    %26 = vector.load %arg5[%c0_12, %c0_13] : memref<8x32xf32, #tpu.memory_space<vmem>>, vector<8x32xf32>
    %cst_14 = arith.constant dense<0.000000e+00> : vector<32x32xf32>
    %27 = tpu.matmul %23, %26, %cst_14 {dimension_numbers = #tpu.dot_dimension_numbers<[1], [0], [0], [1], [0, 0, 1, 1], [], []>} : vector<32x8xf32>, vector<8x32xf32>, vector<32x32xf32> -> vector<32x32xf32>
    %28 = arith.addf %25, %27 : vector<32x32xf32>
    %c0_15 = arith.constant 0 : index
    %c0_16 = arith.constant 0 : index
    %29 = vector.load %arg6[%c0_15, %c0_16] : memref<1x32xf32, #tpu.memory_space<vmem>>, vector<1x32xf32>
    %30 = vector.broadcast %29 : vector<1x32xf32> to vector<32x32xf32>
    %31 = arith.addf %28, %30 : vector<32x32xf32>
    %c0_17 = arith.constant 0 : index
    %c0_18 = arith.constant 0 : index
    %32 = vector.load %arg8[%c0_17, %c0_18] : memref<1x32xf32, #tpu.memory_space<vmem>>, vector<1x32xf32>
    %33 = vector.broadcast %32 : vector<1x32xf32> to vector<32x32xf32>
    %34 = vector.broadcast %0 : vector<32x1xf32> to vector<32x32xf32>
    %35 = arith.mulf %33, %34 : vector<32x32xf32>
    %36 = arith.addf %31, %35 : vector<32x32xf32>
    %c0_19 = arith.constant 0 : index
    %c0_20 = arith.constant 0 : index
    %37 = vector.load %arg9[%c0_19, %c0_20] : memref<32x32xf32, #tpu.memory_space<vmem>>, vector<32x32xf32>
    %38 = arith.addf %36, %37 : vector<32x32xf32>
    %c0_21 = arith.constant 0 : index
    %c0_22 = arith.constant 0 : index
    %39 = vector.load %arg10[%c0_21, %c0_22] : memref<32x32xf32, #tpu.memory_space<vmem>>, vector<32x32xf32>
    tpu.vector_store %arg10[%c0_21, %c0_22], %38 {strides = array<i32>} : memref<32x32xf32, #tpu.memory_space<vmem>>, vector<32x32xf32>,
    return
  }
  func.func @transform_0(%arg0: i32) -> (i32, i32) {
    %c0_i32 = arith.constant 0 : i32
    %c0_i32_0 = arith.constant 0 : i32
    return %arg0, %c0_i32 : i32, i32
  }
  func.func @transform_1(%arg0: i32) -> (i32, i32) {
    %c0_i32 = arith.constant 0 : i32
    %c0_i32_0 = arith.constant 0 : i32
    return %arg0, %c0_i32 : i32, i32
  }
  func.func @transform_2(%arg0: i32) -> (i32, i32) {
    %c0_i32 = arith.constant 0 : i32
    %c0_i32_0 = arith.constant 0 : i32
    return %arg0, %c0_i32 : i32, i32
  }
  func.func @transform_3(%arg0: i32) -> (i32, i32) {
    %c0_i32 = arith.constant 0 : i32
    %c0_i32_0 = arith.constant 0 : i32
    %c0_i32_1 = arith.constant 0 : i32
    return %c0_i32, %c0_i32_0 : i32, i32
  }
  func.func @transform_4(%arg0: i32) -> (i32, i32) {
    %c0_i32 = arith.constant 0 : i32
    %c0_i32_0 = arith.constant 0 : i32
    %c0_i32_1 = arith.constant 0 : i32
    return %c0_i32, %c0_i32_0 : i32, i32
  }
  func.func @transform_5(%arg0: i32) -> (i32, i32) {
    %c0_i32 = arith.constant 0 : i32
    %c0_i32_0 = arith.constant 0 : i32
    %c0_i32_1 = arith.constant 0 : i32
    return %c0_i32, %c0_i32_0 : i32, i32
  }
  func.func @transform_6(%arg0: i32) -> (i32, i32) {
    %c0_i32 = arith.constant 0 : i32
    %c0_i32_0 = arith.constant 0 : i32
    %c0_i32_1 = arith.constant 0 : i32
    return %c0_i32, %c0_i32_0 : i32, i32
  }
  func.func @transform_7(%arg0: i32) -> (i32, i32) {
    %c0_i32 = arith.constant 0 : i32
    %c0_i32_0 = arith.constant 0 : i32
    %c0_i32_1 = arith.constant 0 : i32
    return %c0_i32, %c0_i32_0 : i32, i32
  }
  func.func @transform_8(%arg0: i32) -> (i32, i32) {
    %c0_i32 = arith.constant 0 : i32
    %c0_i32_0 = arith.constant 0 : i32
    %c0_i32_1 = arith.constant 0 : i32
    return %c0_i32, %c0_i32_0 : i32, i32
  }
  func.func @transform_9(%arg0: i32) -> (i32, i32) {
    %c0_i32 = arith.constant 0 : i32
    %c0_i32_0 = arith.constant 0 : i32
    return %arg0, %c0_i32 : i32, i32
  }
}

</mosaic_0001>

<llo_original>
// kernel: tpu_custom_call.1
$region0: #{tpu_custom_call.1}
  #allocation0 [shape = 'u32[]', space=smem, size = 0x4, offset = 0x4, fixed_abs, tag = 'smem constant byte address 0x4 - core index']
  #allocation1 [shape = 'u32[144,128]{1,0:T(1,128)}', space=vmem, size = 0x12000, scoped, tag = 'internal scratch']
  %s0 = inlined_call_operand.vmem [shape: f32[64,16], index: 0, kind: input, shape index: {}]
  %s1 = inlined_call_operand.vmem [shape: f32[64,8], index: 1, kind: input, shape index: {}]
  %s2 = inlined_call_operand.vmem [shape: f32[64,1], index: 2, kind: input, shape index: {}]
  %s3 = inlined_call_operand.vmem [shape: f32[16,32], index: 3, kind: input, shape index: {}]
  %s4 = inlined_call_operand.vmem [shape: f32[8,32], index: 4, kind: input, shape index: {}]
  %s5 = inlined_call_operand.vmem [shape: f32[1,32], index: 5, kind: input, shape index: {}]
  %s6 = inlined_call_operand.vmem [shape: f32[1,16], index: 6, kind: input, shape index: {}]
  %s7 = inlined_call_operand.vmem [shape: f32[1,32], index: 7, kind: input, shape index: {}]
  %s8 = inlined_call_operand.vmem [shape: f32[32,32], index: 8, kind: input, shape index: {}]
  %s9 = inlined_call_operand.vmem [shape: f32[64,32], index: 9, kind: output, shape index: {}]
  %s10 = sld [smem:[#allocation0]]
  $region69: #{tpu_custom_call.1} parent=0
    _
  %s12 = ssub.s32 1, %s10
  %s13 = scalar_select 0, %s12, %s10
  loop: start=0, step=1, limit=4
  $region2: #{tpu_custom_call.1} parent=0 // loop_pre_header
    _
  $region3: #{tpu_custom_call.1} parent=0 // loop_header
    %s15 = sphi 0, %s19
    %p16 = scmp.ge.s32.totalorder %s15, 4
    %s25 = sphi 0, %s27
    %s28 = sphi 0, %s25
    %s29 = sphi 0, %s28
    %s45 = sphi 0, %s29
    %s51 = sphi 0, %s53
    %s54 = sphi 0, %s51
    %s55 = sphi 0, %s54
    %s71 = sphi 0, %s55
    %s77 = sphi 0, %s79
    %s80 = sphi 0, %s77
    %s81 = sphi 0, %s80
    %s97 = sphi 0, %s81
    %s101 = sphi 0, %s101
    %s103 = sphi 0, %s101
    %s104 = sphi 0, %s103
    %s118 = sphi 0, %s104
    %s122 = sphi 0, %s122
    %s124 = sphi 0, %s122
    %s125 = sphi 0, %s124
    %s139 = sphi 0, %s125
    %s143 = sphi 0, %s143
    %s145 = sphi 0, %s143
    %s146 = sphi 0, %s145
    %s160 = sphi 0, %s146
    %s164 = sphi 0, %s164
    %s166 = sphi 0, %s164
    %s167 = sphi 0, %s166
    %s181 = sphi 0, %s167
    %s185 = sphi 0, %s185
    %s187 = sphi 0, %s185
    %s188 = sphi 0, %s187
    %s202 = sphi 0, %s188
    %s206 = sphi 0, %s206
    %s208 = sphi 0, %s206
    %s209 = sphi 0, %s208
    %s223 = sphi 0, %s209
    %s229 = sphi 0, %s231
    %s232 = sphi 0, %s229
    %s233 = sphi 0, %s232
    %s249 = sphi 0, %s233
  $region4: #{tpu_custom_call.1} parent=0 // loop_header_branch
    %18 = sbr.rel (%p16) target = $region8
  $region5: #{tpu_custom_call.1} parent=0 // loop_body
    %s20 = ssub.s32 %s15, 1
    %s21 = ssub.s32 %s15, 2
    %s22 = sadd.s32 %s15, 1
    %s23 = ssub.s32 %s15, %s22
    %p24 = scmp.eq.s32.totalorder %s23, 0
    %s26 = sadd.s32 %s25, 1
    %s27 = scalar_select %p24, %s25, %s26
    %p30 = pneg %p24
    %p31 = scmp.eq.s32.totalorder %s15, 1
    %p32 = por %p30, %p31
    %p33 = scmp.ne.s32.totalorder %s25, %s28
    %p34 = scmp.eq.s32.totalorder %s15, 0
    %p35 = por %p33, %p34
    %p36 = scmp.ne.s32.totalorder %s25, %s28
    %p37 = scmp.eq.s32.totalorder %s20, 1
    %p38 = por %p36, %p37
    %p39 = scmp.ne.s32.totalorder %s28, %s29
    %p40 = scmp.eq.s32.totalorder %s20, 0
    %p41 = por %p39, %p40
    %p42 = scmp.ne.s32.totalorder %s28, %s29
    %p43 = scmp.eq.s32.totalorder %s21, 1
    %p44 = por %p42, %p43
    %p46 = scmp.ne.s32.totalorder %s29, %s45
    %p47 = scmp.eq.s32.totalorder %s21, 0
    %p48 = por %p46, %p47
    %s49 = ssub.s32 %s15, %s22
    %p50 = scmp.eq.s32.totalorder %s49, 0
    %s52 = sadd.s32 %s51, 1
    %s53 = scalar_select %p50, %s51, %s52
    %p56 = pneg %p50
    %p57 = scmp.eq.s32.totalorder %s15, 1
    %p58 = por %p56, %p57
    %p59 = scmp.ne.s32.totalorder %s51, %s54
    %p60 = scmp.eq.s32.totalorder %s15, 0
    %p61 = por %p59, %p60
    %p62 = scmp.ne.s32.totalorder %s51, %s54
    %p63 = scmp.eq.s32.totalorder %s20, 1
    %p64 = por %p62, %p63
    %p65 = scmp.ne.s32.totalorder %s54, %s55
    %p66 = scmp.eq.s32.totalorder %s20, 0
    %p67 = por %p65, %p66
    %p68 = scmp.ne.s32.totalorder %s54, %s55
    %p69 = scmp.eq.s32.totalorder %s21, 1
    %p70 = por %p68, %p69
    %p72 = scmp.ne.s32.totalorder %s55, %s71
    %p73 = scmp.eq.s32.totalorder %s21, 0
    %p74 = por %p72, %p73
    %s75 = ssub.s32 %s15, %s22
    %p76 = scmp.eq.s32.totalorder %s75, 0
    %s78 = sadd.s32 %s77, 1
    %s79 = scalar_select %p76, %s77, %s78
    %p82 = pneg %p76
    %p83 = scmp.eq.s32.totalorder %s15, 1
    %p84 = por %p82, %p83
    %p85 = scmp.ne.s32.totalorder %s77, %s80
    %p86 = scmp.eq.s32.totalorder %s15, 0
    %p87 = por %p85, %p86
    %p88 = scmp.ne.s32.totalorder %s77, %s80
    %p89 = scmp.eq.s32.totalorder %s20, 1
    %p90 = por %p88, %p89
    %p91 = scmp.ne.s32.totalorder %s80, %s81
    %p92 = scmp.eq.s32.totalorder %s20, 0
    %p93 = por %p91, %p92
    %p94 = scmp.ne.s32.totalorder %s80, %s81
    %p95 = scmp.eq.s32.totalorder %s21, 1
    %p96 = por %p94, %p95
    %p98 = scmp.ne.s32.totalorder %s81, %s97
    %p99 = scmp.eq.s32.totalorder %s21, 0
    %p100 = por %p98, %p99
    %s102 = sadd.s32 %s101, 1
    %p105 = scmp.eq.s32.totalorder %s15, 1
    %p106 = scmp.ne.s32.totalorder %s101, %s103
    %p107 = scmp.eq.s32.totalorder %s15, 0
    %p108 = por %p106, %p107
    %p109 = scmp.ne.s32.totalorder %s101, %s103
    %p110 = scmp.eq.s32.totalorder %s20, 1
    %p111 = por %p109, %p110
    %p112 = scmp.ne.s32.totalorder %s103, %s104
    %p113 = scmp.eq.s32.totalorder %s20, 0
    %p114 = por %p112, %p113
    %p115 = scmp.ne.s32.totalorder %s103, %s104
    %p116 = scmp.eq.s32.totalorder %s21, 1
    %p117 = por %p115, %p116
    %p119 = scmp.ne.s32.totalorder %s104, %s118
    %p120 = scmp.eq.s32.totalorder %s21, 0
    %p121 = por %p119, %p120
    %s123 = sadd.s32 %s122, 1
    %p126 = scmp.eq.s32.totalorder %s15, 1
    %p127 = scmp.ne.s32.totalorder %s122, %s124
    %p128 = scmp.eq.s32.totalorder %s15, 0
    %p129 = por %p127, %p128
    %p130 = scmp.ne.s32.totalorder %s122, %s124
    %p131 = scmp.eq.s32.totalorder %s20, 1
    %p132 = por %p130, %p131
    %p133 = scmp.ne.s32.totalorder %s124, %s125
    %p134 = scmp.eq.s32.totalorder %s20, 0
    %p135 = por %p133, %p134
    %p136 = scmp.ne.s32.totalorder %s124, %s125
    %p137 = scmp.eq.s32.totalorder %s21, 1
    %p138 = por %p136, %p137
    %p140 = scmp.ne.s32.totalorder %s125, %s139
    %p141 = scmp.eq.s32.totalorder %s21, 0
    %p142 = por %p140, %p141
    %s144 = sadd.s32 %s143, 1
    %p147 = scmp.eq.s32.totalorder %s15, 1
    %p148 = scmp.ne.s32.totalorder %s143, %s145
    %p149 = scmp.eq.s32.totalorder %s15, 0
    %p150 = por %p148, %p149
    %p151 = scmp.ne.s32.totalorder %s143, %s145
    %p152 = scmp.eq.s32.totalorder %s20, 1
    %p153 = por %p151, %p152
    %p154 = scmp.ne.s32.totalorder %s145, %s146
    %p155 = scmp.eq.s32.totalorder %s20, 0
    %p156 = por %p154, %p155
    %p157 = scmp.ne.s32.totalorder %s145, %s146
    %p158 = scmp.eq.s32.totalorder %s21, 1
    %p159 = por %p157, %p158
    %p161 = scmp.ne.s32.totalorder %s146, %s160
    %p162 = scmp.eq.s32.totalorder %s21, 0
    %p163 = por %p161, %p162
    %s165 = sadd.s32 %s164, 1
    %p168 = scmp.eq.s32.totalorder %s15, 1
    %p169 = scmp.ne.s32.totalorder %s164, %s166
    %p170 = scmp.eq.s32.totalorder %s15, 0
    %p171 = por %p169, %p170
    %p172 = scmp.ne.s32.totalorder %s164, %s166
    %p173 = scmp.eq.s32.totalorder %s20, 1
    %p174 = por %p172, %p173
    %p175 = scmp.ne.s32.totalorder %s166, %s167
    %p176 = scmp.eq.s32.totalorder %s20, 0
    %p177 = por %p175, %p176
    %p178 = scmp.ne.s32.totalorder %s166, %s167
    %p179 = scmp.eq.s32.totalorder %s21, 1
    %p180 = por %p178, %p179
    %p182 = scmp.ne.s32.totalorder %s167, %s181
    %p183 = scmp.eq.s32.totalorder %s21, 0
    %p184 = por %p182, %p183
    %s186 = sadd.s32 %s185, 1
    %p189 = scmp.eq.s32.totalorder %s15, 1
    %p190 = scmp.ne.s32.totalorder %s185, %s187
    %p191 = scmp.eq.s32.totalorder %s15, 0
    %p192 = por %p190, %p191
    %p193 = scmp.ne.s32.totalorder %s185, %s187
    %p194 = scmp.eq.s32.totalorder %s20, 1
    %p195 = por %p193, %p194
    %p196 = scmp.ne.s32.totalorder %s187, %s188
    %p197 = scmp.eq.s32.totalorder %s20, 0
    %p198 = por %p196, %p197
    %p199 = scmp.ne.s32.totalorder %s187, %s188
    %p200 = scmp.eq.s32.totalorder %s21, 1
    %p201 = por %p199, %p200
    %p203 = scmp.ne.s32.totalorder %s188, %s202
    %p204 = scmp.eq.s32.totalorder %s21, 0
    %p205 = por %p203, %p204
    %s207 = sadd.s32 %s206, 1
    %p210 = scmp.eq.s32.totalorder %s15, 1
    %p211 = scmp.ne.s32.totalorder %s206, %s208
    %p212 = scmp.eq.s32.totalorder %s15, 0
    %p213 = por %p211, %p212
    %p214 = scmp.ne.s32.totalorder %s206, %s208
    %p215 = scmp.eq.s32.totalorder %s20, 1
    %p216 = por %p214, %p215
    %p217 = scmp.ne.s32.totalorder %s208, %s209
    %p218 = scmp.eq.s32.totalorder %s20, 0
    %p219 = por %p217, %p218
    %p220 = scmp.ne.s32.totalorder %s208, %s209
    %p221 = scmp.eq.s32.totalorder %s21, 1
    %p222 = por %p220, %p221
    %p224 = scmp.ne.s32.totalorder %s209, %s223
    %p225 = scmp.eq.s32.totalorder %s21, 0
    %p226 = por %p224, %p225
    %s227 = ssub.s32 %s15, %s22
    %p228 = scmp.eq.s32.totalorder %s227, 0
    %s230 = sadd.s32 %s229, 1
    %s231 = scalar_select %p228, %s229, %s230
    %p234 = pneg %p228
    %p235 = scmp.eq.s32.totalorder %s15, 1
    %p236 = por %p234, %p235
    %p237 = scmp.ne.s32.totalorder %s229, %s232
    %p238 = scmp.eq.s32.totalorder %s15, 0
    %p239 = por %p237, %p238
    %p240 = scmp.ne.s32.totalorder %s229, %s232
    %p241 = scmp.eq.s32.totalorder %s20, 1
    %p242 = por %p240, %p241
    %p243 = scmp.ne.s32.totalorder %s232, %s233
    %p244 = scmp.eq.s32.totalorder %s20, 0
    %p245 = por %p243, %p244
    %p246 = scmp.ne.s32.totalorder %s232, %s233
    %p247 = scmp.eq.s32.totalorder %s21, 1
    %p248 = por %p246, %p247
    %p250 = scmp.ne.s32.totalorder %s233, %s249
    %p251 = scmp.eq.s32.totalorder %s21, 0
    %p252 = por %p250, %p251
    %p253 = scmp.le.s32.totalorder 1, %s15
    %p254 = scmp.lt.s32.totalorder %s15, 3
    %p255 = pnand %p253, %p254
    %p256 = pneg %p255
    // Predicated region
    $region9: #{tpu_custom_call.1} parent=5 // pred_check
      _
    $region10: #{tpu_custom_call.1} parent=5 // pred_check_branch
      %258 = sbr.rel (%p255) target = $region12
    $region11: #{tpu_custom_call.1} parent=5 // pred_region
      %s259 = ssub.s32 %s15, 1
      // Predicated region
      $region13: #{tpu_custom_call.1} parent=11 // pred_check
        %p260 = pneg %p114
      $region14: #{tpu_custom_call.1} parent=11 // pred_check_branch
        %262 = sbr.rel (%p260) target = $region16
      $region15: #{tpu_custom_call.1} parent=11 // pred_region
        _
      $region16: #{tpu_custom_call.1} parent=11 // pred_fallthru
        _
      // Predicated region
      $region17: #{tpu_custom_call.1} parent=11 // pred_check
        %p263 = pneg %p135
      $region18: #{tpu_custom_call.1} parent=11 // pred_check_branch
        %265 = sbr.rel (%p263) target = $region20
      $region19: #{tpu_custom_call.1} parent=11 // pred_region
        _
      $region20: #{tpu_custom_call.1} parent=11 // pred_fallthru
        _
      // Predicated region
      $region21: #{tpu_custom_call.1} parent=11 // pred_check
        %p266 = pneg %p156
      $region22: #{tpu_custom_call.1} parent=11 // pred_check_branch
        %268 = sbr.rel (%p266) target = $region24
      $region23: #{tpu_custom_call.1} parent=11 // pred_region
        _
      $region24: #{tpu_custom_call.1} parent=11 // pred_fallthru
        _
      // Predicated region
      $region25: #{tpu_custom_call.1} parent=11 // pred_check
        %p269 = pneg %p177
      $region26: #{tpu_custom_call.1} parent=11 // pred_check_branch
        %271 = sbr.rel (%p269) target = $region28
      $region27: #{tpu_custom_call.1} parent=11 // pred_region
        _
      $region28: #{tpu_custom_call.1} parent=11 // pred_fallthru
        _
      // Predicated region
      $region29: #{tpu_custom_call.1} parent=11 // pred_check
        %p272 = pneg %p198
      $region30: #{tpu_custom_call.1} parent=11 // pred_check_branch
        %274 = sbr.rel (%p272) target = $region32
      $region31: #{tpu_custom_call.1} parent=11 // pred_region
        _
      $region32: #{tpu_custom_call.1} parent=11 // pred_fallthru
        _
      // Predicated region
      $region33: #{tpu_custom_call.1} parent=11 // pred_check
        %p275 = pneg %p219
      $region34: #{tpu_custom_call.1} parent=11 // pred_check_branch
        %277 = sbr.rel (%p275) target = $region36
      $region35: #{tpu_custom_call.1} parent=11 // pred_region
        _
      $region36: #{tpu_custom_call.1} parent=11 // pred_fallthru
        _
    $region12: #{tpu_custom_call.1} parent=5 // pred_fallthru
      _
    %p278 = scmp.lt.s32.totalorder %s15, 2
    // Predicated region
    $region37: #{tpu_custom_call.1} parent=5 // pred_check
      %p279 = pneg %p278
    $region38: #{tpu_custom_call.1} parent=5 // pred_check_branch
      %281 = sbr.rel (%p279) target = $region40
    $region39: #{tpu_custom_call.1} parent=5 // pred_region
      // Predicated region
      $region41: #{tpu_custom_call.1} parent=39 // pred_check
        %p282 = pneg %p35
      $region42: #{tpu_custom_call.1} parent=39 // pred_check_branch
        %284 = sbr.rel (%p282) target = $region44
      $region43: #{tpu_custom_call.1} parent=39 // pred_region
        %s285 = smul.u32 4, %s15
        %p286 = scmp.lt.s32.totalorder %s285, 7
        %s287 = scalar_select %p286, %s285, 7
        %s288 = smul.addr %s287, 8
        %s289 = scalar_lea.vmem %s0, %s288
        %s290 = smul.u32 4, %s15
      $region44: #{tpu_custom_call.1} parent=39 // pred_fallthru
        _
      // Predicated region
      $region45: #{tpu_custom_call.1} parent=39 // pred_check
        %p291 = pneg %p61
      $region46: #{tpu_custom_call.1} parent=39 // pred_check_branch
        %293 = sbr.rel (%p291) target = $region48
      $region47: #{tpu_custom_call.1} parent=39 // pred_region
        %s294 = smul.u32 4, %s15
        %p295 = scmp.lt.s32.totalorder %s294, 7
        %s296 = scalar_select %p295, %s294, 7
        %s297 = smul.addr %s296, 8
        %s298 = scalar_lea.vmem %s1, %s297
        %s299 = smul.u32 4, %s15
      $region48: #{tpu_custom_call.1} parent=39 // pred_fallthru
        _
      // Predicated region
      $region49: #{tpu_custom_call.1} parent=39 // pred_check
        %p300 = pneg %p87
      $region50: #{tpu_custom_call.1} parent=39 // pred_check_branch
        %302 = sbr.rel (%p300) target = $region52
      $region51: #{tpu_custom_call.1} parent=39 // pred_region
        %s303 = smul.u32 4, %s15
        %p304 = scmp.lt.s32.totalorder %s303, 7
        %s305 = scalar_select %p304, %s303, 7
        %s306 = smul.addr %s305, 8
        %s307 = scalar_lea.vmem %s2, %s306
        %s308 = smul.u32 4, %s15
      $region52: #{tpu_custom_call.1} parent=39 // pred_fallthru
        _
    $region40: #{tpu_custom_call.1} parent=5 // pred_fallthru
      _
    %p309 = scmp.le.s32.totalorder 1, %s15
    %p310 = scmp.lt.s32.totalorder %s15, 3
    %p311 = pnand %p309, %p310
    %p312 = pneg %p311
    // Predicated region
    $region53: #{tpu_custom_call.1} parent=5 // pred_check
      _
    $region54: #{tpu_custom_call.1} parent=5 // pred_check_branch
      %314 = sbr.rel (%p311) target = $region56
    $region55: #{tpu_custom_call.1} parent=5 // pred_region
      %s315 = ssub.s32 %s15, 1
      %s316 = smul.u32 4, %s20
      %p317 = scmp.lt.s32.totalorder %s316, 7
      %s318 = scalar_select %p317, %s316, 7
      %s319 = smul.addr %s318, 8
      %s320 = scalar_lea.vmem %s0, %s319
      %p321 = pneg %p41
      %p322 = pneg %p38
      %s323 = smul.u32 4, %s20
      %p324 = scmp.lt.s32.totalorder %s323, 7
      %s325 = scalar_select %p324, %s323, 7
      %s326 = smul.addr %s325, 8
      %s327 = scalar_lea.vmem %s1, %s326
      %p328 = pneg %p67
      %p329 = pneg %p64
      %s330 = smul.u32 4, %s20
      %p331 = scmp.lt.s32.totalorder %s330, 7
      %s332 = scalar_select %p331, %s330, 7
      %s333 = smul.addr %s332, 8
      %s334 = scalar_lea.vmem %s2, %s333
      %p335 = pneg %p93
      %p336 = pneg %p90
      %p337 = pneg %p114
      %p338 = pneg %p111
      %p339 = pneg %p135
      %p340 = pneg %p132
      %p341 = pneg %p156
      %p342 = pneg %p153
      %p343 = pneg %p177
      %p344 = pneg %p174
      %p345 = pneg %p198
      %p346 = pneg %p195
      %p347 = pneg %p219
      %p348 = pneg %p216
      %p349 = pneg %p245
      %p350 = pneg %p242
      %s351 = smul.u32 4, %s20
      %p352 = scmp.lt.s32.totalorder %s351, 7
      %s353 = scalar_select %p352, %s351, 7
      %s354 = smul.addr %s353, 8
      %s355 = scalar_lea.vmem %s9, %s354
      %s356 = smul.u32 4, %s20
      %p357 = scmp.lt.s32.totalorder %s356, 7
      %s358 = scalar_select %p357, %s356, 7
      %s359 = smul.addr %s358, 8
      %s360 = scalar_lea.vmem %s0, %s359
      %s361 = smul.u32 4, %s20
      %s362 = smul.u32 4, %s20
      %p363 = scmp.lt.s32.totalorder %s362, 7
      %s364 = scalar_select %p363, %s362, 7
      %s365 = smul.addr %s364, 8
      %s366 = scalar_lea.vmem %s1, %s365
      %s367 = smul.u32 4, %s20
      %s368 = smul.u32 4, %s20
      %p369 = scmp.lt.s32.totalorder %s368, 7
      %s370 = scalar_select %p369, %s368, 7
      %s371 = smul.addr %s370, 8
      %s372 = scalar_lea.vmem %s2, %s371
      %s373 = smul.u32 4, %s20
      %s374 = smul.u32 4, %s20
      %p375 = scmp.lt.s32.totalorder %s374, 7
      %s376 = scalar_select %p375, %s374, 7
      %s377 = smul.addr %s376, 8
      %s378 = scalar_lea.vmem %s9, %s377
      %s379 = smul.u32 4, %s20
      %v380 = vld [vmem:[%s372] sm:$0xff]
      %v381 = vld [vmem:[%s372 + $0x8] sm:$0xff]
      %v382 = vld [vmem:[%s372 + $0x10] sm:$0xff]
      %v383 = vld [vmem:[%s372 + $0x18] sm:$0xff]
      %v384 = vsub.f32 1.0, %v380
      %v385 = vsub.f32 1.0, %v381
      %v386 = vsub.f32 1.0, %v382
      %v387 = vsub.f32 1.0, %v383
      %v388 = vld [vmem:[%s360] sm:$0xff]
      %v389 = vld [vmem:[%s360 + $0x8] sm:$0xff]
      %v390 = vld [vmem:[%s360 + $0x10] sm:$0xff]
      %v391 = vld [vmem:[%s360 + $0x18] sm:$0xff]
      %393 = vset.pattern.permute.xlu0 0
      %394 = vperm.xlu0 %393, %v384
      %v395 = vpop.permute.xlu0 %394
      %398 = vset.pattern.permute.xlu0 0
      %399 = vperm.xlu0 %398, %v385
      %v400 = vpop.permute.xlu0 %399
      %403 = vset.pattern.permute.xlu0 0
      %404 = vperm.xlu0 %403, %v386
      %v405 = vpop.permute.xlu0 %404
      %408 = vset.pattern.permute.xlu0 0
      %409 = vperm.xlu0 %408, %v387
      %v410 = vpop.permute.xlu0 %409
      %v412 = vmul.f32 %v388, %v395
      %v413 = vmul.f32 %v389, %v400
      %v414 = vmul.f32 %v390, %v405
      %v415 = vmul.f32 %v391, %v410
      %v416 = vld [vmem:[%s6] sm:$0x1]
      %v418 = vlaneseq
      %v419 = vshrl.u32 %v418, 7
      %v420 = vsub.s32 0, %v419
      %v421 = vrot.slane %v416, %v420
      %424 = vset.pattern.permute.xlu0 0
      %425 = vperm.xlu0 %424, %v380
      %v426 = vpop.permute.xlu0 %425
      %429 = vset.pattern.permute.xlu0 0
      %430 = vperm.xlu0 %429, %v381
      %v431 = vpop.permute.xlu0 %430
      %434 = vset.pattern.permute.xlu0 0
      %435 = vperm.xlu0 %434, %v382
      %v436 = vpop.permute.xlu0 %435
      %439 = vset.pattern.permute.xlu0 0
      %440 = vperm.xlu0 %439, %v383
      %v441 = vpop.permute.xlu0 %440
      %v443 = vmul.f32 %v421, %v426
      %v444 = vmul.f32 %v421, %v431
      %v445 = vmul.f32 %v421, %v436
      %v446 = vmul.f32 %v421, %v441
      %v447 = vadd.f32 %v412, %v443
      %v448 = vadd.f32 %v413, %v444
      %v449 = vadd.f32 %v414, %v445
      %v450 = vadd.f32 %v415, %v446
      %v451 = vld [vmem:[%s366] sm:$0xff]
      %v452 = vld [vmem:[%s366 + $0x8] sm:$0xff]
      %v453 = vld [vmem:[%s366 + $0x10] sm:$0xff]
      %v454 = vld [vmem:[%s366 + $0x18] sm:$0xff]
      %vm455 = vcmask 64512
      %v456 = vsel %vm455, %v451, -inf
      %457 = vmax.xlane.f32.xlu0 %v456
      %v458 = vpop.xlane.xlu0 %457
      %v459 = vsel %vm455, %v452, -inf
      %460 = vmax.xlane.f32.xlu0 %v459
      %v461 = vpop.xlane.xlu0 %460
      %v462 = vsel %vm455, %v453, -inf
      %463 = vmax.xlane.f32.xlu0 %v462
      %v464 = vpop.xlane.xlu0 %463
      %v465 = vsel %vm455, %v454, -inf
      %466 = vmax.xlane.f32.xlu0 %v465
      %v467 = vpop.xlane.xlu0 %466
      %v468 = vsub.f32 %v451, %v458
      %v469 = vsub.f32 %v452, %v461
      %v470 = vsub.f32 %v453, %v464
      %v471 = vsub.f32 %v454, %v467
      %v472 = vmul.f32 %v468, 1.442695
      %v473 = vpow.pop %v472
      %v474 = vmul.f32 %v469, 1.442695
      %v475 = vpow.pop %v474
      %v476 = vmul.f32 %v470, 1.442695
      %v477 = vpow.pop %v476
      %v478 = vmul.f32 %v471, 1.442695
      %v479 = vpow.pop %v478
      %v480 = vsel %vm455, %v473, 0.0
      %481 = vadd.xlane.f32.xlu0 %v480
      %v482 = vpop.xlane.xlu0 %481
      %v483 = vsel %vm455, %v475, 0.0
      %484 = vadd.xlane.f32.xlu0 %v483
      %v485 = vpop.xlane.xlu0 %484
      %v486 = vsel %vm455, %v477, 0.0
      %487 = vadd.xlane.f32.xlu0 %v486
      %v488 = vpop.xlane.xlu0 %487
      %v489 = vsel %vm455, %v479, 0.0
      %490 = vadd.xlane.f32.xlu0 %v489
      %v491 = vpop.xlane.xlu0 %490
      %v492 = vrcp.pop %v482
      %v493 = vrcp.pop %v485
      %v494 = vrcp.pop %v488
      %v495 = vrcp.pop %v491
      %v496 = vmul.f32 %v473, %v492
      %v497 = vmul.f32 %v475, %v493
      %v498 = vmul.f32 %v477, %v494
      %v499 = vmul.f32 %v479, %v495
      %v500 = vmul.f32 %v496, %v395
      %v501 = vmul.f32 %v497, %v400
      %v502 = vmul.f32 %v498, %v405
      %v503 = vmul.f32 %v499, %v410
      %v504 = vld [vmem:[%s3] sm:$0xff]
      %v505 = vld [vmem:[%s3 + $0x8] sm:$0xff]
      %v506 = vld [vmem:[%s4] sm:$0xff]
      %v508 = vsel %vm455, %v500, 0
      %v511 = vsel %vm455, %v501, 0
      %v514 = vsel %vm455, %v502, 0
      %v517 = vsel %vm455, %v503, 0
      %519 = vmatprep.subr.mxu0 0.0
      %520 = vmatpush1.msra.mxu0 %v506
      %521 = vmatprep.subr.mxu0 0.0
      %522 = vmatpush1.msra.mxu0 0.0
      %523 = vmatprep.subr.mxu0 0.0
      %524 = vmatpush1.msra.mxu0 0.0
      %525 = vmatprep.subr.mxu0 0.0
      %526 = vmatpush1.msra.mxu0 0.0
      %527 = vmatprep.subr.mxu0 0.0
      %528 = vmatpush1.msra.mxu0 0.0
      %529 = vmatprep.subr.mxu0 0.0
      %530 = vmatpush1.msra.mxu0 0.0
      %531 = vmatprep.subr.mxu0 0.0
      %532 = vmatpush1.msra.mxu0 0.0
      %533 = vmatprep.subr.mxu0 0.0
      %534 = vmatpush1.msra.mxu0 0.0
      %535 = vmatprep.subr.mxu0 0.0
      %536 = vmatpush1.msra.mxu0 0.0
      %537 = vmatprep.subr.mxu0 0.0
      %538 = vmatpush1.msra.mxu0 0.0
      %539 = vmatprep.subr.mxu0 0.0
      %540 = vmatpush1.msra.mxu0 0.0
      %541 = vmatprep.subr.mxu0 0.0
      %542 = vmatpush1.msra.mxu0 0.0
      %543 = vmatprep.subr.mxu0 0.0
      %544 = vmatpush1.msra.mxu0 0.0
      %545 = vmatprep.subr.mxu0 0.0
      %546 = vmatpush1.msra.mxu0 0.0
      %547 = vmatprep.subr.mxu0 0.0
      %548 = vmatpush1.msra.mxu0 0.0
      %549 = vmatprep.subr.mxu0 0.0
      %550 = vmatpush1.msra.mxu0 0.0
      %551 = vmatprep.subr.mxu0 0.0
      %552 = vmatpush1.msra.mxu0 0.0
      %553 = vmatprep.subr.mxu0 0.0
      %554 = vmatpush1.msra.mxu0 0.0
      %555 = vmatprep.subr.mxu0 0.0
      %556 = vmatpush1.msra.mxu0 0.0
      %557 = vmatprep.subr.mxu0 0.0
      %558 = vmatpush1.msra.mxu0 0.0
      %559 = vmatprep.subr.mxu0 0.0
      %560 = vmatpush1.msra.mxu0 0.0
      %561 = vmatprep.subr.mxu0 0.0
      %562 = vmatpush1.msra.mxu0 0.0
      %563 = vmatprep.subr.mxu0 0.0
      %564 = vmatpush1.msra.mxu0 0.0
      %565 = vmatprep.subr.mxu0 0.0
      %566 = vmatpush1.msra.mxu0 0.0
      %567 = vmatprep.subr.mxu0 0.0
      %568 = vmatpush1.msra.mxu0 0.0
      %569 = vmatprep.subr.mxu0 0.0
      %570 = vmatpush1.msra.mxu0 0.0
      %571 = vmatprep.subr.mxu0 0.0
      %572 = vmatpush1.msra.mxu0 0.0
      %573 = vmatprep.subr.mxu0 0.0
      %574 = vmatpush1.msra.mxu0 0.0
      %575 = vmatprep.subr.mxu0 0.0
      %576 = vmatpush1.msra.mxu0 0.0
      %577 = vmatprep.subr.mxu0 0.0
      %578 = vmatpush1.msra.mxu0 0.0
      %579 = vmatprep.subr.mxu0 0.0
      %580 = vmatpush1.msra.mxu0 0.0
      %581 = vmatprep.subr.mxu0 0.0
      %582 = vmatpush1.msra.mxu0 0.0
      %583 = vmatprep.mubr.f32.mxu0 0.0
      %584 = vmatmul.mubr.f32.gmra.mrb[0].mxu0 %v508
      %v585 = vpop.f32.mrb[0].mxu0
      %v586 = vadd.f32 0.0, %v585
      %v587 = vpop.f32.mrb[0].mxu0
      %588 = vmatprep.mubr.f32.mxu0 0.0
      %589 = vmatmul.mubr.f32.gmra.mrb[0].mxu0 %v511
      %v590 = vpop.f32.mrb[0].mxu0
      %v591 = vadd.f32 0.0, %v590
      %v592 = vpop.f32.mrb[0].mxu0
      %593 = vmatprep.mubr.f32.mxu0 0.0
      %594 = vmatmul.mubr.f32.gmra.mrb[0].mxu0 %v514
      %v595 = vpop.f32.mrb[0].mxu0
      %v596 = vadd.f32 0.0, %v595
      %v597 = vpop.f32.mrb[0].mxu0
      %598 = vmatprep.mubr.f32.mxu0 0.0
      %599 = vmatmul.mubr.f32.gmra.mrb[0].mxu0 %v517
      %v600 = vpop.f32.mrb[0].mxu0
      %v601 = vadd.f32 0.0, %v600
      %v602 = vpop.f32.mrb[0].mxu0
      %603 = vdwg.mxu0
      %vm604 = vcmask 130048
      %v606 = vsel %vm604, %v447, 0
      %v609 = vsel %vm604, %v448, 0
      %v612 = vsel %vm604, %v449, 0
      %v615 = vsel %vm604, %v450, 0
      %617 = vmatprep.subr.mxu0 0.0
      %618 = vmatpush1.msra.mxu0 %v504
      %619 = vmatprep.subr.mxu0 0.0
      %620 = vmatpush1.msra.mxu0 %v505
      %621 = vmatprep.subr.mxu0 0.0
      %622 = vmatpush1.msra.mxu0 0.0
      %623 = vmatprep.subr.mxu0 0.0
      %624 = vmatpush1.msra.mxu0 0.0
      %625 = vmatprep.subr.mxu0 0.0
      %626 = vmatpush1.msra.mxu0 0.0
      %627 = vmatprep.subr.mxu0 0.0
      %628 = vmatpush1.msra.mxu0 0.0
      %629 = vmatprep.subr.mxu0 0.0
      %630 = vmatpush1.msra.mxu0 0.0
      %631 = vmatprep.subr.mxu0 0.0
      %632 = vmatpush1.msra.mxu0 0.0
      %633 = vmatprep.subr.mxu0 0.0
      %634 = vmatpush1.msra.mxu0 0.0
      %635 = vmatprep.subr.mxu0 0.0
      %636 = vmatpush1.msra.mxu0 0.0
      %637 = vmatprep.subr.mxu0 0.0
      %638 = vmatpush1.msra.mxu0 0.0
      %639 = vmatprep.subr.mxu0 0.0
      %640 = vmatpush1.msra.mxu0 0.0
      %641 = vmatprep.subr.mxu0 0.0
      %642 = vmatpush1.msra.mxu0 0.0
      %643 = vmatprep.subr.mxu0 0.0
      %644 = vmatpush1.msra.mxu0 0.0
      %645 = vmatprep.subr.mxu0 0.0
      %646 = vmatpush1.msra.mxu0 0.0
      %647 = vmatprep.subr.mxu0 0.0
      %648 = vmatpush1.msra.mxu0 0.0
      %649 = vmatprep.subr.mxu0 0.0
      %650 = vmatpush1.msra.mxu0 0.0
      %651 = vmatprep.subr.mxu0 0.0
      %652 = vmatpush1.msra.mxu0 0.0
      %653 = vmatprep.subr.mxu0 0.0
      %654 = vmatpush1.msra.mxu0 0.0
      %655 = vmatprep.subr.mxu0 0.0
      %656 = vmatpush1.msra.mxu0 0.0
      %657 = vmatprep.subr.mxu0 0.0
      %658 = vmatpush1.msra.mxu0 0.0
      %659 = vmatprep.subr.mxu0 0.0
      %660 = vmatpush1.msra.mxu0 0.0
      %661 = vmatprep.subr.mxu0 0.0
      %662 = vmatpush1.msra.mxu0 0.0
      %663 = vmatprep.subr.mxu0 0.0
      %664 = vmatpush1.msra.mxu0 0.0
      %665 = vmatprep.subr.mxu0 0.0
      %666 = vmatpush1.msra.mxu0 0.0
      %667 = vmatprep.subr.mxu0 0.0
      %668 = vmatpush1.msra.mxu0 0.0
      %669 = vmatprep.subr.mxu0 0.0
      %670 = vmatpush1.msra.mxu0 0.0
      %671 = vmatprep.subr.mxu0 0.0
      %672 = vmatpush1.msra.mxu0 0.0
      %673 = vmatprep.subr.mxu0 0.0
      %674 = vmatpush1.msra.mxu0 0.0
      %675 = vmatprep.subr.mxu0 0.0
      %676 = vmatpush1.msra.mxu0 0.0
      %677 = vmatprep.subr.mxu0 0.0
      %678 = vmatpush1.msra.mxu0 0.0
      %679 = vmatprep.subr.mxu0 0.0
      %680 = vmatpush1.msra.mxu0 0.0
      %681 = vmatprep.mubr.f32.mxu0 0.0
      %682 = vmatmul.mubr.f32.gmra.mrb[0].mxu0 %v606
      %v683 = vpop.f32.mrb[0].mxu0
      %v684 = vadd.f32 %v586, %v683
      %v685 = vpop.f32.mrb[0].mxu0
      %686 = vmatprep.mubr.f32.mxu0 0.0
      %687 = vmatmul.mubr.f32.gmra.mrb[0].mxu0 %v609
      %v688 = vpop.f32.mrb[0].mxu0
      %v689 = vadd.f32 %v591, %v688
      %v690 = vpop.f32.mrb[0].mxu0
      %691 = vmatprep.mubr.f32.mxu0 0.0
      %692 = vmatmul.mubr.f32.gmra.mrb[0].mxu0 %v612
      %v693 = vpop.f32.mrb[0].mxu0
      %v694 = vadd.f32 %v596, %v693
      %v695 = vpop.f32.mrb[0].mxu0
      %696 = vmatprep.mubr.f32.mxu0 0.0
      %697 = vmatmul.mubr.f32.gmra.mrb[0].mxu0 %v615
      %v698 = vpop.f32.mrb[0].mxu0
      %v699 = vadd.f32 %v601, %v698
      %v700 = vpop.f32.mrb[0].mxu0
      %701 = vdwg.mxu0
      %v702 = vld [vmem:[%s5] sm:$0x1]
      %v704 = vlaneseq
      %v705 = vshrl.u32 %v704, 7
      %v706 = vsub.s32 0, %v705
      %v707 = vrot.slane %v702, %v706
      %v709 = vadd.f32 %v684, %v707
      %v710 = vadd.f32 %v689, %v707
      %v711 = vadd.f32 %v694, %v707
      %v712 = vadd.f32 %v699, %v707
      %v713 = vld [vmem:[%s7] sm:$0x1]
      %v715 = vlaneseq
      %v716 = vshrl.u32 %v715, 7
      %v717 = vsub.s32 0, %v716
      %v718 = vrot.slane %v713, %v717
      %v720 = vmul.f32 %v718, %v426
      %v721 = vmul.f32 %v718, %v431
      %v722 = vmul.f32 %v718, %v436
      %v723 = vmul.f32 %v718, %v441
      %v724 = vadd.f32 %v709, %v720
      %v725 = vadd.f32 %v710, %v721
      %v726 = vadd.f32 %v711, %v722
      %v727 = vadd.f32 %v712, %v723
      %v728 = vld [vmem:[%s8] sm:$0xff]
      %v729 = vld [vmem:[%s8 + $0x8] sm:$0xff]
      %v730 = vld [vmem:[%s8 + $0x10] sm:$0xff]
      %v731 = vld [vmem:[%s8 + $0x18] sm:$0xff]
      %v732 = vadd.f32 %v724, %v728
      %v733 = vadd.f32 %v725, %v729
      %v734 = vadd.f32 %v726, %v730
      %v735 = vadd.f32 %v727, %v731
      %vm736 = vcmask 261120
      %737 = vst.msk [vmem:[%s378] sm:$0xff] %vm736, %v732
      %738 = vst.msk [vmem:[%s378 + $0x8] sm:$0xff] %vm736, %v733
      %739 = vst.msk [vmem:[%s378 + $0x10] sm:$0xff] %vm736, %v734
      %740 = vst.msk [vmem:[%s378 + $0x18] sm:$0xff] %vm736, %v735
      %s741 = smul.u32 4, %s20
      %p742 = scmp.lt.s32.totalorder %s741, 7
      %s743 = scalar_select %p742, %s741, 7
      %s744 = smul.addr %s743, 8
      %s745 = scalar_lea.vmem %s9, %s744
      // Predicated region
      $region57: #{tpu_custom_call.1} parent=55 // pred_check
        %p746 = pneg %p242
      $region58: #{tpu_custom_call.1} parent=55 // pred_check_branch
        %748 = sbr.rel (%p746) target = $region60
      $region59: #{tpu_custom_call.1} parent=55 // pred_region
        %s749 = smul.u32 4, %s20
      $region60: #{tpu_custom_call.1} parent=55 // pred_fallthru
        _
    $region56: #{tpu_custom_call.1} parent=5 // pred_fallthru
      _
    %p750 = scmp.le.s32.totalorder 2, %s15
    // Predicated region
    $region61: #{tpu_custom_call.1} parent=5 // pred_check
      %p751 = pneg %p750
    $region62: #{tpu_custom_call.1} parent=5 // pred_check_branch
      %753 = sbr.rel (%p751) target = $region64
    $region63: #{tpu_custom_call.1} parent=5 // pred_region
      %s754 = ssub.s32 %s15, 2
      // Predicated region
      $region65: #{tpu_custom_call.1} parent=63 // pred_check
        %p755 = pneg %p248
      $region66: #{tpu_custom_call.1} parent=63 // pred_check_branch
        %757 = sbr.rel (%p755) target = $region68
      $region67: #{tpu_custom_call.1} parent=63 // pred_region
        %s758 = smul.u32 4, %s21
        %p759 = scmp.lt.s32.totalorder %s758, 7
        %s760 = scalar_select %p759, %s758, 7
        %s761 = smul.addr %s760, 8
        %s762 = scalar_lea.vmem %s9, %s761
      $region68: #{tpu_custom_call.1} parent=63 // pred_fallthru
        _
    $region64: #{tpu_custom_call.1} parent=5 // pred_fallthru
      _
  $region6: #{tpu_custom_call.1} parent=0 // loop_footer
    %s19 = sadd.s32 1, %s15
  $region7: #{tpu_custom_call.1} parent=0 // loop_footer_branch
    %14 = sbr.rel target = $region3
  $region8: #{tpu_custom_call.1} parent=0 // loop_exit
    _

</llo_original>
